<compile_context>
chip_gen: v6e
topology: v6e:2x2x1
jax: 0.10.0
libtpu: 0.0.40
codegen_flags: <defaults>
</compile_context>

<pallas_src>
import functools

import numpy as np
import jax
import jax.numpy as jnp
from jax.experimental import pallas as pl
from jax.experimental.pallas import tpu as pltpu


# --------------------------- hardware-aware sizing -------------------------- #

_FALLBACK_VMEM_CAP = 64 << 20   # conservative (v7x-sized) fallback


def _vmem_capacity_bytes():
    try:
        return int(pltpu.get_tpu_info().vmem_capacity_bytes)
    except Exception:
        return _FALLBACK_VMEM_CAP


def _vmem_budget_bytes():
    # ~1/4 of physical VMEM for our (double-buffered) blocks: 32 MiB on
    # v5e/v6e (128 MiB), 16 MiB on v7x (64 MiB). Leaves compiler headroom.
    return max(8 << 20, _vmem_capacity_bytes() // 4)


def _min_grid_steps():
    # v7x has 2 TensorCores: give the ("parallel",) batch axis >= 2 steps so
    # both cores get work. v5e/v6e are single-TC: do NOT force a split (it only
    # halves the block and adds ~0.35us/step overhead).
    try:
        kind = jax.devices()[0].device_kind.lower()
        if "v7" in kind or "tpu7" in kind:
            return 2
    except Exception:
        pass
    return 1


def _compiler_params(dimension_semantics, needed_bytes):
    cap = _vmem_capacity_bytes()
    limit = int(min(cap, max(32 << 20, 2 * needed_bytes + (4 << 20))))
    return pltpu.CompilerParams(
        dimension_semantics=dimension_semantics, vmem_limit_bytes=limit)


def _pick_batch_block(B, fits, min_steps):
    """Largest divisor of B whose block fits the VMEM budget while (if B allows)
    keeping at least `min_steps` grid steps."""
    best = None
    for cand in range(1, B + 1):
        if B % cand:
            continue
        if B >= min_steps and (B // cand) < min_steps:
            continue
        if not fits(cand):
            continue
        best = cand
    return best


def _round_up(n, m):
    return ((n + m - 1) // m) * m


# ----------------------------- Pallas kernels ------------------------------ #

def _covpool_center_kernel(x_ref, y_ref, *, m_true, use_bf16):
    # x_ref: (bblk, Cp, Mp) zero-padded; y_ref: (bblk, Cp, Cp).
    x = x_ref[...]
    inv_m = jnp.float32(1.0 / m_true)
    mu = jnp.sum(x, axis=-1, keepdims=True) * inv_m        # mean over the true M
    xc = x - mu
    if x.shape[-1] != m_true:
        # zero the padded lanes so they contribute nothing to xc @ xc^T
        col = jax.lax.broadcasted_iota(jnp.int32, x.shape, dimension=2)
        xc = jnp.where(col < m_true, xc, 0.0)
    lhs = xc.astype(jnp.bfloat16) if use_bf16 else xc
    y = jax.lax.dot_general(
        lhs, lhs,
        dimension_numbers=(((2,), (2,)), ((0,), (0,))),
        preferred_element_type=jnp.float32)
    y_ref[...] = y * inv_m


def _covpool_chunk_kernel(x_ref, mu_col_ref, mu_row_ref, y_ref, *, inv_m, use_bf16):
    # Chunked-M reduction: accumulate x_k @ x_k^T in the resident output block,
    # apply the rank-1 mean correction on the last chunk:
    #   cov = (sum_k x_k x_k^T)/M - mu mu^T        (padded zeros contribute 0)
    k = pl.program_id(1)

    @pl.when(k == 0)
    def _():
        y_ref[...] = jnp.zeros_like(y_ref)

    x = x_ref[...]                                         # (bblk, Cp, tm)
    lhs = x.astype(jnp.bfloat16) if use_bf16 else x
    y_ref[...] += jax.lax.dot_general(
        lhs, lhs,
        dimension_numbers=(((2,), (2,)), ((0,), (0,))),
        preferred_element_type=jnp.float32)

    @pl.when(k == pl.num_programs(1) - 1)
    def _():
        outer = mu_col_ref[...] * mu_row_ref[...]          # (bblk,Cp,1)*(bblk,1,Cp)
        y_ref[...] = y_ref[...] * jnp.float32(inv_m) - outer


def _power_kernel(v_ref, s_ref, q_ref, *, use_bf16):
    # v_ref: (bblk, Cp, Cp) eigenvectors, s_ref: (bblk, 1, Cp) sqrt-eigenvalues.
    v = v_ref[...]
    s = s_ref[...]
    tmp = v * s                                            # VPU column scale == V @ diag(sqrt d)
    if use_bf16:
        tmp = tmp.astype(jnp.bfloat16)
        v = v.astype(jnp.bfloat16)
    q_ref[...] = jax.lax.dot_general(                      # tmp @ V^T (contract last dims)
        tmp, v,
        dimension_numbers=(((2,), (2,)), ((0,), (0,))),
        preferred_element_type=jnp.float32)


# ------------------------------ Wrappers ----------------------------------- #

def cov_pool(x_p, m_true, *, use_bf16=False, force_chunk_tm=None):
    """x_p: (B, Cp, Mp) float32 zero-padded so Cp % 128 == 0 and Mp % 128 == 0.
    Returns (B, Cp, Cp); the top-left (C, C) block is the true covariance."""
    B, Cp, Mp = x_p.shape
    budget = _vmem_budget_bytes()
    min_steps = _min_grid_steps()

    def fits(bblk, tm):
        in_bytes = bblk * Cp * tm * 4
        out_bytes = bblk * Cp * Cp * 4
        return 2 * (in_bytes + out_bytes) <= budget        # double-buffered in + out

    if force_chunk_tm is None:
        bblk = _pick_batch_block(B, lambda bb: fits(bb, Mp), min_steps)
        if bblk is not None:
            needed = 2 * (bblk * Cp * Mp + bblk * Cp * Cp) * 4
            kernel = functools.partial(
                _covpool_center_kernel, m_true=m_true, use_bf16=use_bf16)
            return pl.pallas_call(
                kernel,
                out_shape=jax.ShapeDtypeStruct((B, Cp, Cp), jnp.float32),
                grid=(B // bblk,),
                in_specs=[pl.BlockSpec((bblk, Cp, Mp), lambda b: (b, 0, 0))],
                out_specs=pl.BlockSpec((bblk, Cp, Cp), lambda b: (b, 0, 0)),
                compiler_params=_compiler_params(("parallel",), needed),
            )(x_p)

    # Chunked-M path for large feature maps (or when forced for testing).
    if force_chunk_tm is not None:
        tm = int(force_chunk_tm)
    else:
        tm = 128
        for cand in range(Mp, 127, -128):                  # largest divisor of Mp, mult of 128
            if Mp % cand == 0 and fits(1, cand):
                tm = cand
                break
    assert Mp % tm == 0, (Mp, tm)
    bblk = _pick_batch_block(B, lambda bb: fits(bb, tm), min_steps) or 1

    mu = jnp.sum(x_p, axis=-1) * (1.0 / m_true)            # (B, Cp); padded lanes sum to 0
    mu_col = mu[:, :, None]                                # (B, Cp, 1)
    mu_row = mu[:, None, :]                                # (B, 1, Cp)

    needed = 2 * (bblk * Cp * tm + bblk * Cp * Cp + 2 * bblk * Cp) * 4
    kernel = functools.partial(
        _covpool_chunk_kernel, inv_m=1.0 / m_true, use_bf16=use_bf16)
    return pl.pallas_call(
        kernel,
        out_shape=jax.ShapeDtypeStruct((B, Cp, Cp), jnp.float32),
        grid=(B // bblk, Mp // tm),
        in_specs=[
            pl.BlockSpec((bblk, Cp, tm), lambda b, k: (b, 0, k)),
            pl.BlockSpec((bblk, Cp, 1), lambda b, k: (b, 0, 0)),
            pl.BlockSpec((bblk, 1, Cp), lambda b, k: (b, 0, 0)),
        ],
        out_specs=pl.BlockSpec((bblk, Cp, Cp), lambda b, k: (b, 0, 0)),
        compiler_params=_compiler_params(("parallel", "arbitrary"), needed),
    )(x_p, mu_col, mu_row)


def power_reconstruct(v_p, s_row_p, *, use_bf16=False):
    """v_p: (B, Cp, Cp) zero-padded eigenvectors, s_row_p: (B, 1, Cp) zero-padded
    sqrt-eigenvalues -> q = V diag(sqrt(d)) V^T (zero in the padded block)."""
    B, Cp, _ = v_p.shape
    budget = _vmem_budget_bytes()
    min_steps = _min_grid_steps()

    def fits(bblk):
        return 2 * bblk * (2 * Cp * Cp + Cp) * 4 <= budget

    bblk = _pick_batch_block(B, fits, min_steps) or 1
    # TODO(synk): tile the (Cp, Cp) blocks for very large C where even bblk=1
    #             exceeds the VMEM budget (not needed at typical 256..2048 dims).
    needed = 2 * bblk * (2 * Cp * Cp + Cp) * 4
    kernel = functools.partial(_power_kernel, use_bf16=use_bf16)
    return pl.pallas_call(
        kernel,
        out_shape=jax.ShapeDtypeStruct((B, Cp, Cp), jnp.float32),
        grid=(B // bblk,),
        in_specs=[
            pl.BlockSpec((bblk, Cp, Cp), lambda b: (b, 0, 0)),
            pl.BlockSpec((bblk, 1, Cp), lambda b: (b, 0, 0)),
        ],
        out_specs=pl.BlockSpec((bblk, Cp, Cp), lambda b: (b, 0, 0)),
        compiler_params=_compiler_params(("parallel",), needed),
    )(v_p, s_row_p)


def _pad_bcm(x_bcm):
    """Zero-pad (B, C, M) so channels and spatial dims are multiples of 128
    (lane-dense blocks / unmasked stores / full MXU contraction width)."""
    B, C, M = x_bcm.shape
    Cp = _round_up(C, 128)
    Mp = _round_up(M, 128)
    if Cp != C or Mp != M:
        x_bcm = jnp.pad(x_bcm, ((0, 0), (0, Cp - C), (0, Mp - M)))
    return x_bcm, Cp, Mp


def svd_topn_forward(x_nchw, is_vec=True, use_bf16_matmul=False):
    """Forward pass of SVD_TopN with dimension_reduction=None (module default).

    x_nchw: (B, C, H, W) float32 (NCHW like PyTorch).
    Returns: (B, C*(C+1)//2, 1) if is_vec else (B, C*C).
    """
    # TODO(synk): optional conv_dr_block (1x1 conv + BatchNorm2d + ReLU) for
    #             dimension_reduction != None is not implemented (module default is None).
    B, C, H, W = x_nchw.shape
    M = H * W
    x_bcm = x_nchw.reshape(B, C, M).astype(jnp.float32)
    x_p, Cp, Mp = _pad_bcm(x_bcm)

    # ---- Covpool (Pallas) ----
    cov = cov_pool(x_p, M, use_bf16=use_bf16_matmul)[:, :C, :C]    # (B, C, C) sym PSD

    # ---- Eigendecomposition (eigh on symmetric PSD replaces general SVD) ----
    w, v = jnp.linalg.eigh(cov)                                    # w ascending
    eps = jnp.finfo(jnp.float32).eps                               # TPU has no f64
    n_trunc = min(50, C)                                           # torch: s[:, -50:] = eps
    w = w.at[:, :n_trunc].set(eps)
    w = jnp.where(w <= eps, eps, w)
    sqrt_w = jnp.sqrt(w)                                           # (B, C)

    # ---- Power (Pallas): q = V diag(sqrt(d)) V^T on the padded lane-dense slab ----
    if Cp != C:
        v_p = jnp.pad(v, ((0, 0), (0, Cp - C), (0, Cp - C)))
        s_p = jnp.pad(sqrt_w, ((0, 0), (0, Cp - C)))[:, None, :]
    else:
        v_p, s_p = v, sqrt_w[:, None, :]
    q_p = power_reconstruct(v_p, s_p, use_bf16=use_bf16_matmul)    # (B, Cp, Cp)

    if is_vec:
        # Row-major upper-triangular gather directly off the padded flat slab
        # (identical ordering to torch.triu(ones).reshape(-1).nonzero()).
        ri, ci = np.triu_indices(C)
        idx = jnp.asarray(ri * Cp + ci, dtype=jnp.int32)
        out2d = q_p.reshape(B, Cp * Cp)[:, idx]                    # (B, C*(C+1)//2)
        return out2d[:, :, None]                                   # (B, K, 1) like torch
    else:
        return q_p[:, :C, :C].reshape(B, C * C)


# ------------------------------ references --------------------------------- #

def _cov_ref_jax(x_bcm):
    xc = x_bcm - jnp.mean(x_bcm, axis=-1, keepdims=True)
    return jnp.einsum('bcm,bdm->bcd', xc, xc,
                      precision=jax.lax.Precision.HIGHEST) / x_bcm.shape[-1]


# -------------------------------- Main -------------------------------------- #

if __name__ == "__main__":
    key = jax.random.PRNGKey(0)
    B, C, H, W = 2, 64, 8, 8                 # output_dim = 64*65/2 = 2080
    x = jax.random.normal(key, (B, C, H, W), dtype=jnp.float32)

    out = jax.block_until_ready(svd_topn_forward(x, is_vec=True))
    assert out.shape == (B, C * (C + 1) // 2, 1), out.shape
    assert bool(jnp.all(jnp.isfinite(out)))

    # -- unit-check covpool (single full-M block, in-kernel centering + pad mask) --
    x_bcm = x.reshape(B, C, H * W).astype(jnp.float32)
    x_p, Cp, Mp = _pad_bcm(x_bcm)
    cov_pal = cov_pool(x_p, H * W)[:, :C, :C]
    cov_ref = _cov_ref_jax(x_bcm)
    assert bool(jnp.allclose(cov_pal, cov_ref, atol=2e-3, rtol=2e-3)), "covpool mismatch"

    # -- unit-check the chunked-M reduction path (two 128-lane chunks) --
    x2_bcm = jax.random.normal(jax.random.PRNGKey(1), (B, C, 256), dtype=jnp.float32)
    x2_p, _, _ = _pad_bcm(x2_bcm)
    cov2_pal = cov_pool(x2_p, 256, force_chunk_tm=128)[:, :C, :C]
    assert bool(jnp.allclose(cov2_pal, _cov_ref_jax(x2_bcm), atol=2e-3, rtol=2e-3)), \
        "chunked covpool mismatch"

    # -- unit-check the power kernel against an einsum reference --
    kv = jax.random.normal(jax.random.PRNGKey(2), (B, Cp, Cp), dtype=jnp.float32)
    ks = jax.random.uniform(jax.random.PRNGKey(3), (B, 1, Cp), dtype=jnp.float32) + 0.1
    q_pal = power_reconstruct(kv, ks)
    q_ref = jnp.einsum('bik,bjk->bij', kv * ks, kv,
                       precision=jax.lax.Precision.HIGHEST)
    assert bool(jnp.allclose(q_pal, q_ref, atol=5e-3, rtol=5e-3)), "power mismatch"

    print("KERNEL_OK")
</pallas_src>

<mosaic_0001>
module attributes {stable_mosaic.version = 11 : i64} {
  func.func @_covpool_center_kernel(%arg0: i32, %arg1: memref<2x128x128xf32, #tpu.memory_space<vmem>>, %arg2: memref<2x128x128xf32, #tpu.memory_space<vmem>>) attributes {dimension_semantics = [#tpu.dimension_semantics<parallel>], iteration_bounds = array<i64: 1>, scalar_prefetch = 0 : i64, scratch_operands = 0 : i64, tpu.core_type = #tpu.core_type<tc>, window_params = [{transform_indices = @transform_0, window_bounds = array<i64: 2, 128, 128>}, {transform_indices = @transform_1, window_bounds = array<i64: 2, 128, 128>}]} {
    %c0 = arith.constant 0 : index
    %c0_0 = arith.constant 0 : index
    %c0_1 = arith.constant 0 : index
    %0 = vector.load %arg1[%c0, %c0_0, %c0_1] : memref<2x128x128xf32, #tpu.memory_space<vmem>>, vector<2x128x128xf32>
    %cst = arith.constant dense<0.000000e+00> : vector<2x128xf32>
    %1 = vector.multi_reduction <add>, %0, %cst [2] : vector<2x128x128xf32> to vector<2x128xf32>
    %2 = vector.shape_cast %1 : vector<2x128xf32> to vector<2x128x1xf32>
    %cst_2 = arith.constant 1.562500e-02 : f32
    %3 = vector.broadcast %cst_2 : f32 to vector<2x128x1xf32>
    %4 = arith.mulf %2, %3 : vector<2x128x1xf32>
    %5 = vector.broadcast %4 : vector<2x128x1xf32> to vector<2x128x128xf32>
    %6 = arith.subf %0, %5 : vector<2x128x128xf32>
    %7 = tpu.iota {dimensions = array<i32: 2>} : vector<2x128x128xi32>
    %c64_i32 = arith.constant 64 : i32
    %8 = vector.broadcast %c64_i32 : i32 to vector<2x128x128xi32>
    %9 = arith.cmpi slt, %7, %8 : vector<2x128x128xi32>
    %cst_3 = arith.constant 0.000000e+00 : f32
    %10 = vector.broadcast %cst_3 : f32 to vector<2x128x128xf32>
    %11 = arith.select %9, %6, %10 : vector<2x128x128xi1>, vector<2x128x128xf32>
    %cst_4 = arith.constant dense<0.000000e+00> : vector<2x128x128xf32>
    %12 = tpu.matmul %11, %11, %cst_4 {dimension_numbers = #tpu.dot_dimension_numbers<[2], [2], [1], [1], [0, 0, 0, 1, 1, 1], [0], [0]>} : vector<2x128x128xf32>, vector<2x128x128xf32>, vector<2x128x128xf32> -> vector<2x128x128xf32>
    %cst_5 = arith.constant 1.562500e-02 : f32
    %13 = vector.broadcast %cst_5 : f32 to vector<2x128x128xf32>
    %14 = arith.mulf %12, %13 : vector<2x128x128xf32>
    %c0_6 = arith.constant 0 : index
    %c0_7 = arith.constant 0 : index
    %c0_8 = arith.constant 0 : index
    %15 = vector.load %arg2[%c0_6, %c0_7, %c0_8] : memref<2x128x128xf32, #tpu.memory_space<vmem>>, vector<2x128x128xf32>
    tpu.vector_store %arg2[%c0_6, %c0_7, %c0_8], %14 {strides = array<i32>} : memref<2x128x128xf32, #tpu.memory_space<vmem>>, vector<2x128x128xf32>,
    return
  }
  func.func @transform_0(%arg0: i32) -> (i32, i32, i32) {
    %c0_i32 = arith.constant 0 : i32
    %c0_i32_0 = arith.constant 0 : i32
    %c0_i32_1 = arith.constant 0 : i32
    return %arg0, %c0_i32, %c0_i32_0 : i32, i32, i32
  }
  func.func @transform_1(%arg0: i32) -> (i32, i32, i32) {
    %c0_i32 = arith.constant 0 : i32
    %c0_i32_0 = arith.constant 0 : i32
    %c0_i32_1 = arith.constant 0 : i32
    return %arg0, %c0_i32, %c0_i32_0 : i32, i32, i32
  }
}

</mosaic_0001>

<llo_original>
// kernel: tpu_custom_call.1
$region0: #{tpu_custom_call.1}
  #allocation0 [shape = 'u32[]', space=smem, size = 0x4, offset = 0x4, fixed_abs, tag = 'smem constant byte address 0x4 - core index']
  #allocation1 [shape = 'u32[144,128]{1,0:T(1,128)}', space=vmem, size = 0x12000, scoped, tag = 'internal scratch']
  %s0 = inlined_call_operand.hbm [shape: f32[2,128,128], index: 0, kind: input, shape index: {}]
  %s1 = inlined_call_operand.hbm [shape: f32[2,128,128], index: 1, kind: output, shape index: {}]
  %s2 = sld [smem:[#allocation0]]
  $region18: #{tpu_custom_call.1} parent=0
    _
  %s4 = ssub.s32 1, %s2
  %s5 = scalar_select 0, %s4, %s2
  $region1: #{tpu_custom_call.1} parent=0
    #allocation2 [shape = 'u8[131072]{0}', space=vmem, size = 0x20000, scoped, tag = 'input window, operand 0, single buffered']
    #allocation3 [shape = 's32[1]{0}', space=sflag, size = 0x4, scoped, tag = 'scoped memory for tpu_custom_call.1']
    #allocation4 [shape = 's32[1]{0}', space=sflag, size = 0x4, scoped, tag = 'scoped memory for tpu_custom_call.1']
    #allocation5 [shape = 'u8[131072]{0}', space=vmem, size = 0x20000, scoped, tag = 'output window, operand 0, single buffered']
    %6 = vsyncpa [#allocation3], 0
    %7 = vsyncpa [#allocation4], 0
    // Predicated region
    $region2: #{tpu_custom_call.1} parent=1 // pred_check
      _
    $region3: #{tpu_custom_call.1} parent=1 // pred_check_branch
      %9 = sbr.rel (0) target = $region5
    $region4: #{tpu_custom_call.1} parent=1 // pred_region
      %s11 = ssub.s32 4096, 4096
      %12 = vsyncadd [#allocation3], %s11
      %s13 = sshll.u32 [#allocation2], 4
      %s14 = int_to_ptr.vmem [resolvable:$true] %s13
      %19 = dma.hbm_to_vmem [thread:$0]  %s0, 4096, %s14, [#allocation3], 128, 128, 8
    $region5: #{tpu_custom_call.1} parent=1 // pred_fallthru
      _
    // Predicated region
    $region6: #{tpu_custom_call.1} parent=1 // pred_check
      _
    $region7: #{tpu_custom_call.1} parent=1 // pred_check_branch
      %21 = sbr.rel (0) target = $region9
    $region8: #{tpu_custom_call.1} parent=1 // pred_region
      %22 = dma.done [#allocation3], 4096
    $region9: #{tpu_custom_call.1} parent=1 // pred_fallthru
      _
    %v23 = vld [vmem:[#allocation2] sm:$0xff]
    %v24 = vld [vmem:[#allocation2 + $0x8] sm:$0xff]
    %v25 = vld [vmem:[#allocation2 + $0x10] sm:$0xff]
    %v26 = vld [vmem:[#allocation2 + $0x18] sm:$0xff]
    %v27 = vld [vmem:[#allocation2 + $0x20] sm:$0xff]
    %v28 = vld [vmem:[#allocation2 + $0x28] sm:$0xff]
    %v29 = vld [vmem:[#allocation2 + $0x30] sm:$0xff]
    %v30 = vld [vmem:[#allocation2 + $0x38] sm:$0xff]
    %v31 = vld [vmem:[#allocation2 + $0x40] sm:$0xff]
    %v32 = vld [vmem:[#allocation2 + $0x48] sm:$0xff]
    %v33 = vld [vmem:[#allocation2 + $0x50] sm:$0xff]
    %v34 = vld [vmem:[#allocation2 + $0x58] sm:$0xff]
    %v35 = vld [vmem:[#allocation2 + $0x60] sm:$0xff]
    %v36 = vld [vmem:[#allocation2 + $0x68] sm:$0xff]
    %v37 = vld [vmem:[#allocation2 + $0x70] sm:$0xff]
    %v38 = vld [vmem:[#allocation2 + $0x78] sm:$0xff]
    %v39 = vld [vmem:[#allocation2 + $0x80] sm:$0xff]
    %v40 = vld [vmem:[#allocation2 + $0x88] sm:$0xff]
    %v41 = vld [vmem:[#allocation2 + $0x90] sm:$0xff]
    %v42 = vld [vmem:[#allocation2 + $0x98] sm:$0xff]
    %v43 = vld [vmem:[#allocation2 + $0xa0] sm:$0xff]
    %v44 = vld [vmem:[#allocation2 + $0xa8] sm:$0xff]
    %v45 = vld [vmem:[#allocation2 + $0xb0] sm:$0xff]
    %v46 = vld [vmem:[#allocation2 + $0xb8] sm:$0xff]
    %v47 = vld [vmem:[#allocation2 + $0xc0] sm:$0xff]
    %v48 = vld [vmem:[#allocation2 + $0xc8] sm:$0xff]
    %v49 = vld [vmem:[#allocation2 + $0xd0] sm:$0xff]
    %v50 = vld [vmem:[#allocation2 + $0xd8] sm:$0xff]
    %v51 = vld [vmem:[#allocation2 + $0xe0] sm:$0xff]
    %v52 = vld [vmem:[#allocation2 + $0xe8] sm:$0xff]
    %v53 = vld [vmem:[#allocation2 + $0xf0] sm:$0xff]
    %v54 = vld [vmem:[#allocation2 + $0xf8] sm:$0xff]
    %55 = vadd.xlane.f32.xlu0 %v23
    %v56 = vpop.xlane.xlu0 %55
    %57 = vadd.xlane.f32.xlu0 %v24
    %v58 = vpop.xlane.xlu0 %57
    %59 = vadd.xlane.f32.xlu0 %v25
    %v60 = vpop.xlane.xlu0 %59
    %61 = vadd.xlane.f32.xlu0 %v26
    %v62 = vpop.xlane.xlu0 %61
    %63 = vadd.xlane.f32.xlu0 %v27
    %v64 = vpop.xlane.xlu0 %63
    %65 = vadd.xlane.f32.xlu0 %v28
    %v66 = vpop.xlane.xlu0 %65
    %67 = vadd.xlane.f32.xlu0 %v29
    %v68 = vpop.xlane.xlu0 %67
    %69 = vadd.xlane.f32.xlu0 %v30
    %v70 = vpop.xlane.xlu0 %69
    %71 = vadd.xlane.f32.xlu0 %v31
    %v72 = vpop.xlane.xlu0 %71
    %73 = vadd.xlane.f32.xlu0 %v32
    %v74 = vpop.xlane.xlu0 %73
    %75 = vadd.xlane.f32.xlu0 %v33
    %v76 = vpop.xlane.xlu0 %75
    %77 = vadd.xlane.f32.xlu0 %v34
    %v78 = vpop.xlane.xlu0 %77
    %79 = vadd.xlane.f32.xlu0 %v35
    %v80 = vpop.xlane.xlu0 %79
    %81 = vadd.xlane.f32.xlu0 %v36
    %v82 = vpop.xlane.xlu0 %81
    %83 = vadd.xlane.f32.xlu0 %v37
    %v84 = vpop.xlane.xlu0 %83
    %85 = vadd.xlane.f32.xlu0 %v38
    %v86 = vpop.xlane.xlu0 %85
    %87 = vadd.xlane.f32.xlu0 %v39
    %v88 = vpop.xlane.xlu0 %87
    %89 = vadd.xlane.f32.xlu0 %v40
    %v90 = vpop.xlane.xlu0 %89
    %91 = vadd.xlane.f32.xlu0 %v41
    %v92 = vpop.xlane.xlu0 %91
    %93 = vadd.xlane.f32.xlu0 %v42
    %v94 = vpop.xlane.xlu0 %93
    %95 = vadd.xlane.f32.xlu0 %v43
    %v96 = vpop.xlane.xlu0 %95
    %97 = vadd.xlane.f32.xlu0 %v44
    %v98 = vpop.xlane.xlu0 %97
    %99 = vadd.xlane.f32.xlu0 %v45
    %v100 = vpop.xlane.xlu0 %99
    %101 = vadd.xlane.f32.xlu0 %v46
    %v102 = vpop.xlane.xlu0 %101
    %103 = vadd.xlane.f32.xlu0 %v47
    %v104 = vpop.xlane.xlu0 %103
    %105 = vadd.xlane.f32.xlu0 %v48
    %v106 = vpop.xlane.xlu0 %105
    %107 = vadd.xlane.f32.xlu0 %v49
    %v108 = vpop.xlane.xlu0 %107
    %109 = vadd.xlane.f32.xlu0 %v50
    %v110 = vpop.xlane.xlu0 %109
    %111 = vadd.xlane.f32.xlu0 %v51
    %v112 = vpop.xlane.xlu0 %111
    %113 = vadd.xlane.f32.xlu0 %v52
    %v114 = vpop.xlane.xlu0 %113
    %115 = vadd.xlane.f32.xlu0 %v53
    %v116 = vpop.xlane.xlu0 %115
    %117 = vadd.xlane.f32.xlu0 %v54
    %v118 = vpop.xlane.xlu0 %117
    %v119 = vmul.f32 %v56, 0.015625
    %v120 = vmul.f32 %v58, 0.015625
    %v121 = vmul.f32 %v60, 0.015625
    %v122 = vmul.f32 %v62, 0.015625
    %v123 = vmul.f32 %v64, 0.015625
    %v124 = vmul.f32 %v66, 0.015625
    %v125 = vmul.f32 %v68, 0.015625
    %v126 = vmul.f32 %v70, 0.015625
    %v127 = vmul.f32 %v72, 0.015625
    %v128 = vmul.f32 %v74, 0.015625
    %v129 = vmul.f32 %v76, 0.015625
    %v130 = vmul.f32 %v78, 0.015625
    %v131 = vmul.f32 %v80, 0.015625
    %v132 = vmul.f32 %v82, 0.015625
    %v133 = vmul.f32 %v84, 0.015625
    %v134 = vmul.f32 %v86, 0.015625
    %v135 = vmul.f32 %v88, 0.015625
    %v136 = vmul.f32 %v90, 0.015625
    %v137 = vmul.f32 %v92, 0.015625
    %v138 = vmul.f32 %v94, 0.015625
    %v139 = vmul.f32 %v96, 0.015625
    %v140 = vmul.f32 %v98, 0.015625
    %v141 = vmul.f32 %v100, 0.015625
    %v142 = vmul.f32 %v102, 0.015625
    %v143 = vmul.f32 %v104, 0.015625
    %v144 = vmul.f32 %v106, 0.015625
    %v145 = vmul.f32 %v108, 0.015625
    %v146 = vmul.f32 %v110, 0.015625
    %v147 = vmul.f32 %v112, 0.015625
    %v148 = vmul.f32 %v114, 0.015625
    %v149 = vmul.f32 %v116, 0.015625
    %v150 = vmul.f32 %v118, 0.015625
    %v151 = vsub.f32 %v23, %v119
    %v152 = vsub.f32 %v24, %v120
    %v153 = vsub.f32 %v25, %v121
    %v154 = vsub.f32 %v26, %v122
    %v155 = vsub.f32 %v27, %v123
    %v156 = vsub.f32 %v28, %v124
    %v157 = vsub.f32 %v29, %v125
    %v158 = vsub.f32 %v30, %v126
    %v159 = vsub.f32 %v31, %v127
    %v160 = vsub.f32 %v32, %v128
    %v161 = vsub.f32 %v33, %v129
    %v162 = vsub.f32 %v34, %v130
    %v163 = vsub.f32 %v35, %v131
    %v164 = vsub.f32 %v36, %v132
    %v165 = vsub.f32 %v37, %v133
    %v166 = vsub.f32 %v38, %v134
    %v167 = vsub.f32 %v39, %v135
    %v168 = vsub.f32 %v40, %v136
    %v169 = vsub.f32 %v41, %v137
    %v170 = vsub.f32 %v42, %v138
    %v171 = vsub.f32 %v43, %v139
    %v172 = vsub.f32 %v44, %v140
    %v173 = vsub.f32 %v45, %v141
    %v174 = vsub.f32 %v46, %v142
    %v175 = vsub.f32 %v47, %v143
    %v176 = vsub.f32 %v48, %v144
    %v177 = vsub.f32 %v49, %v145
    %v178 = vsub.f32 %v50, %v146
    %v179 = vsub.f32 %v51, %v147
    %v180 = vsub.f32 %v52, %v148
    %v181 = vsub.f32 %v53, %v149
    %v182 = vsub.f32 %v54, %v150
    %v183 = vlaneseq
    %v184 = vand.u32 %v183, 127
    %vm185 = vcmp.lt.s32.totalorder %v184, 64
    %v186 = vsel %vm185, %v151, 0.0
    %v187 = vsel %vm185, %v152, 0.0
    %v188 = vsel %vm185, %v153, 0.0
    %v189 = vsel %vm185, %v154, 0.0
    %v190 = vsel %vm185, %v155, 0.0
    %v191 = vsel %vm185, %v156, 0.0
    %v192 = vsel %vm185, %v157, 0.0
    %v193 = vsel %vm185, %v158, 0.0
    %v194 = vsel %vm185, %v159, 0.0
    %v195 = vsel %vm185, %v160, 0.0
    %v196 = vsel %vm185, %v161, 0.0
    %v197 = vsel %vm185, %v162, 0.0
    %v198 = vsel %vm185, %v163, 0.0
    %v199 = vsel %vm185, %v164, 0.0
    %v200 = vsel %vm185, %v165, 0.0
    %v201 = vsel %vm185, %v166, 0.0
    %v202 = vsel %vm185, %v167, 0.0
    %v203 = vsel %vm185, %v168, 0.0
    %v204 = vsel %vm185, %v169, 0.0
    %v205 = vsel %vm185, %v170, 0.0
    %v206 = vsel %vm185, %v171, 0.0
    %v207 = vsel %vm185, %v172, 0.0
    %v208 = vsel %vm185, %v173, 0.0
    %v209 = vsel %vm185, %v174, 0.0
    %v210 = vsel %vm185, %v175, 0.0
    %v211 = vsel %vm185, %v176, 0.0
    %v212 = vsel %vm185, %v177, 0.0
    %v213 = vsel %vm185, %v178, 0.0
    %v214 = vsel %vm185, %v179, 0.0
    %v215 = vsel %vm185, %v180, 0.0
    %v216 = vsel %vm185, %v181, 0.0
    %v217 = vsel %vm185, %v182, 0.0
    %218 = vmatprep.subr.mxu0 0.0
    %219 = vmatpush1.xpose.msra.mxu0 %v201
    %220 = vmatprep.subr.mxu0 0.0
    %221 = vmatpush1.xpose.msra.mxu0 %v200
    %222 = vmatprep.subr.mxu0 0.0
    %223 = vmatpush1.xpose.msra.mxu0 %v199
    %224 = vmatprep.subr.mxu0 0.0
    %225 = vmatpush1.xpose.msra.mxu0 %v198
    %226 = vmatprep.subr.mxu0 0.0
    %227 = vmatpush1.xpose.msra.mxu0 %v197
    %228 = vmatprep.subr.mxu0 0.0
    %229 = vmatpush1.xpose.msra.mxu0 %v196
    %230 = vmatprep.subr.mxu0 0.0
    %231 = vmatpush1.xpose.msra.mxu0 %v195
    %232 = vmatprep.subr.mxu0 0.0
    %233 = vmatpush1.xpose.msra.mxu0 %v194
    %234 = vmatprep.subr.mxu0 0.0
    %235 = vmatpush1.xpose.msra.mxu0 %v193
    %236 = vmatprep.subr.mxu0 0.0
    %237 = vmatpush1.xpose.msra.mxu0 %v192
    %238 = vmatprep.subr.mxu0 0.0
    %239 = vmatpush1.xpose.msra.mxu0 %v191
    %240 = vmatprep.subr.mxu0 0.0
    %241 = vmatpush1.xpose.msra.mxu0 %v190
    %242 = vmatprep.subr.mxu0 0.0
    %243 = vmatpush1.xpose.msra.mxu0 %v189
    %244 = vmatprep.subr.mxu0 0.0
    %245 = vmatpush1.xpose.msra.mxu0 %v188
    %246 = vmatprep.subr.mxu0 0.0
    %247 = vmatpush1.xpose.msra.mxu0 %v187
    %248 = vmatprep.subr.mxu0 0.0
    %249 = vmatpush1.xpose.msra.mxu0 %v186
    %250 = vmatprep.subr.mxu0 0.0
    %251 = vmatpush2.xpose.msra.mxu0 0.0
    %252 = vmatprep.subr.mxu0 0.0
    %253 = vmatpush2.xpose.msra.mxu0 0.0
    %254 = vmatprep.subr.mxu0 0.0
    %255 = vmatpush2.xpose.msra.mxu0 0.0
    %256 = vmatprep.subr.mxu0 0.0
    %257 = vmatpush2.xpose.msra.mxu0 0.0
    %258 = vmatprep.subr.mxu0 0.0
    %259 = vmatpush2.xpose.msra.mxu0 0.0
    %260 = vmatprep.subr.mxu0 0.0
    %261 = vmatpush2.xpose.msra.mxu0 0.0
    %262 = vmatprep.subr.mxu0 0.0
    %263 = vmatpush2.xpose.msra.mxu0 0.0
    %264 = vmatprep.subr.mxu0 0.0
    %265 = vmatpush2.xpose.msra.mxu0 0.0
    %266 = vmatprep.subr.mxu0 0.0
    %267 = vmatpush2.xpose.msra.mxu0 0.0
    %268 = vmatprep.subr.mxu0 0.0
    %269 = vmatpush2.xpose.msra.mxu0 0.0
    %270 = vmatprep.subr.mxu0 0.0
    %271 = vmatpush2.xpose.msra.mxu0 0.0
    %272 = vmatprep.subr.mxu0 0.0
    %273 = vmatpush2.xpose.msra.mxu0 0.0
    %274 = vmatprep.subr.mxu0 0.0
    %275 = vmatpush2.xpose.msra.mxu0 0.0
    %276 = vmatprep.subr.mxu0 0.0
    %277 = vmatpush2.xpose.msra.mxu0 0.0
    %278 = vmatprep.subr.mxu0 0.0
    %279 = vmatpush2.xpose.msra.mxu0 0.0
    %280 = vmatprep.subr.mxu0 0.0
    %281 = vmatpush2.xpose.msra.mxu0 0.0
    %282 = vmatprep.mubr.f32.mxu0 0.0
    %283 = vmatmul.mubr.f32.gmra.mxu0 %v186
    %v284 = vpop.f32.mrf.mxu0
    %v285 = vadd.f32 0.0, %v284
    %v286 = vpop.f32.mrf.mxu0
    %287 = vmatprep.mubr.f32.mxu0 0.0
    %288 = vmatmul.mubr.f32.gmra.mxu0 %v187
    %v289 = vpop.f32.mrf.mxu0
    %v290 = vadd.f32 0.0, %v289
    %v291 = vpop.f32.mrf.mxu0
    %292 = vmatprep.mubr.f32.mxu0 0.0
    %293 = vmatmul.mubr.f32.gmra.mxu0 %v188
    %v294 = vpop.f32.mrf.mxu0
    %v295 = vadd.f32 0.0, %v294
    %v296 = vpop.f32.mrf.mxu0
    %297 = vmatprep.mubr.f32.mxu0 0.0
    %298 = vmatmul.mubr.f32.gmra.mxu0 %v189
    %v299 = vpop.f32.mrf.mxu0
    %v300 = vadd.f32 0.0, %v299
    %v301 = vpop.f32.mrf.mxu0
    %302 = vmatprep.mubr.f32.mxu0 0.0
    %303 = vmatmul.mubr.f32.gmra.mxu0 %v190
    %v304 = vpop.f32.mrf.mxu0
    %v305 = vadd.f32 0.0, %v304
    %v306 = vpop.f32.mrf.mxu0
    %307 = vmatprep.mubr.f32.mxu0 0.0
    %308 = vmatmul.mubr.f32.gmra.mxu0 %v191
    %v309 = vpop.f32.mrf.mxu0
    %v310 = vadd.f32 0.0, %v309
    %v311 = vpop.f32.mrf.mxu0
    %312 = vmatprep.mubr.f32.mxu0 0.0
    %313 = vmatmul.mubr.f32.gmra.mxu0 %v192
    %v314 = vpop.f32.mrf.mxu0
    %v315 = vadd.f32 0.0, %v314
    %v316 = vpop.f32.mrf.mxu0
    %317 = vmatprep.mubr.f32.mxu0 0.0
    %318 = vmatmul.mubr.f32.gmra.mxu0 %v193
    %v319 = vpop.f32.mrf.mxu0
    %v320 = vadd.f32 0.0, %v319
    %v321 = vpop.f32.mrf.mxu0
    %322 = vmatprep.mubr.f32.mxu0 0.0
    %323 = vmatmul.mubr.f32.gmra.mxu0 %v194
    %v324 = vpop.f32.mrf.mxu0
    %v325 = vadd.f32 0.0, %v324
    %v326 = vpop.f32.mrf.mxu0
    %327 = vmatprep.mubr.f32.mxu0 0.0
    %328 = vmatmul.mubr.f32.gmra.mxu0 %v195
    %v329 = vpop.f32.mrf.mxu0
    %v330 = vadd.f32 0.0, %v329
    %v331 = vpop.f32.mrf.mxu0
    %332 = vmatprep.mubr.f32.mxu0 0.0
    %333 = vmatmul.mubr.f32.gmra.mxu0 %v196
    %v334 = vpop.f32.mrf.mxu0
    %v335 = vadd.f32 0.0, %v334
    %v336 = vpop.f32.mrf.mxu0
    %337 = vmatprep.mubr.f32.mxu0 0.0
    %338 = vmatmul.mubr.f32.gmra.mxu0 %v197
    %v339 = vpop.f32.mrf.mxu0
    %v340 = vadd.f32 0.0, %v339
    %v341 = vpop.f32.mrf.mxu0
    %342 = vmatprep.mubr.f32.mxu0 0.0
    %343 = vmatmul.mubr.f32.gmra.mxu0 %v198
    %v344 = vpop.f32.mrf.mxu0
    %v345 = vadd.f32 0.0, %v344
    %v346 = vpop.f32.mrf.mxu0
    %347 = vmatprep.mubr.f32.mxu0 0.0
    %348 = vmatmul.mubr.f32.gmra.mxu0 %v199
    %v349 = vpop.f32.mrf.mxu0
    %v350 = vadd.f32 0.0, %v349
    %v351 = vpop.f32.mrf.mxu0
    %352 = vmatprep.mubr.f32.mxu0 0.0
    %353 = vmatmul.mubr.f32.gmra.mxu0 %v200
    %v354 = vpop.f32.mrf.mxu0
    %v355 = vadd.f32 0.0, %v354
    %v356 = vpop.f32.mrf.mxu0
    %357 = vmatprep.mubr.f32.mxu0 0.0
    %358 = vmatmul.mubr.f32.gmra.mxu0 %v201
    %v359 = vpop.f32.mrf.mxu0
    %v360 = vadd.f32 0.0, %v359
    %v361 = vpop.f32.mrf.mxu0
    %362 = vdwg.mxu0
    %363 = vmatprep.subr.mxu0 0.0
    %364 = vmatpush1.xpose.msra.mxu0 %v217
    %365 = vmatprep.subr.mxu0 0.0
    %366 = vmatpush1.xpose.msra.mxu0 %v216
    %367 = vmatprep.subr.mxu0 0.0
    %368 = vmatpush1.xpose.msra.mxu0 %v215
    %369 = vmatprep.subr.mxu0 0.0
    %370 = vmatpush1.xpose.msra.mxu0 %v214
    %371 = vmatprep.subr.mxu0 0.0
    %372 = vmatpush1.xpose.msra.mxu0 %v213
    %373 = vmatprep.subr.mxu0 0.0
    %374 = vmatpush1.xpose.msra.mxu0 %v212
    %375 = vmatprep.subr.mxu0 0.0
    %376 = vmatpush1.xpose.msra.mxu0 %v211
    %377 = vmatprep.subr.mxu0 0.0
    %378 = vmatpush1.xpose.msra.mxu0 %v210
    %379 = vmatprep.subr.mxu0 0.0
    %380 = vmatpush1.xpose.msra.mxu0 %v209
    %381 = vmatprep.subr.mxu0 0.0
    %382 = vmatpush1.xpose.msra.mxu0 %v208
    %383 = vmatprep.subr.mxu0 0.0
    %384 = vmatpush1.xpose.msra.mxu0 %v207
    %385 = vmatprep.subr.mxu0 0.0
    %386 = vmatpush1.xpose.msra.mxu0 %v206
    %387 = vmatprep.subr.mxu0 0.0
    %388 = vmatpush1.xpose.msra.mxu0 %v205
    %389 = vmatprep.subr.mxu0 0.0
    %390 = vmatpush1.xpose.msra.mxu0 %v204
    %391 = vmatprep.subr.mxu0 0.0
    %392 = vmatpush1.xpose.msra.mxu0 %v203
    %393 = vmatprep.subr.mxu0 0.0
    %394 = vmatpush1.xpose.msra.mxu0 %v202
    %395 = vmatprep.subr.mxu0 0.0
    %396 = vmatpush2.xpose.msra.mxu0 0.0
    %397 = vmatprep.subr.mxu0 0.0
    %398 = vmatpush2.xpose.msra.mxu0 0.0
    %399 = vmatprep.subr.mxu0 0.0
    %400 = vmatpush2.xpose.msra.mxu0 0.0
    %401 = vmatprep.subr.mxu0 0.0
    %402 = vmatpush2.xpose.msra.mxu0 0.0
    %403 = vmatprep.subr.mxu0 0.0
    %404 = vmatpush2.xpose.msra.mxu0 0.0
    %405 = vmatprep.subr.mxu0 0.0
    %406 = vmatpush2.xpose.msra.mxu0 0.0
    %407 = vmatprep.subr.mxu0 0.0
    %408 = vmatpush2.xpose.msra.mxu0 0.0
    %409 = vmatprep.subr.mxu0 0.0
    %410 = vmatpush2.xpose.msra.mxu0 0.0
    %411 = vmatprep.subr.mxu0 0.0
    %412 = vmatpush2.xpose.msra.mxu0 0.0
    %413 = vmatprep.subr.mxu0 0.0
    %414 = vmatpush2.xpose.msra.mxu0 0.0
    %415 = vmatprep.subr.mxu0 0.0
    %416 = vmatpush2.xpose.msra.mxu0 0.0
    %417 = vmatprep.subr.mxu0 0.0
    %418 = vmatpush2.xpose.msra.mxu0 0.0
    %419 = vmatprep.subr.mxu0 0.0
    %420 = vmatpush2.xpose.msra.mxu0 0.0
    %421 = vmatprep.subr.mxu0 0.0
    %422 = vmatpush2.xpose.msra.mxu0 0.0
    %423 = vmatprep.subr.mxu0 0.0
    %424 = vmatpush2.xpose.msra.mxu0 0.0
    %425 = vmatprep.subr.mxu0 0.0
    %426 = vmatpush2.xpose.msra.mxu0 0.0
    %427 = vmatprep.mubr.f32.mxu0 0.0
    %428 = vmatmul.mubr.f32.gmra.mxu0 %v202
    %v429 = vpop.f32.mrf.mxu0
    %v430 = vadd.f32 0.0, %v429
    %v431 = vpop.f32.mrf.mxu0
    %432 = vmatprep.mubr.f32.mxu0 0.0
    %433 = vmatmul.mubr.f32.gmra.mxu0 %v203
    %v434 = vpop.f32.mrf.mxu0
    %v435 = vadd.f32 0.0, %v434
    %v436 = vpop.f32.mrf.mxu0
    %437 = vmatprep.mubr.f32.mxu0 0.0
    %438 = vmatmul.mubr.f32.gmra.mxu0 %v204
    %v439 = vpop.f32.mrf.mxu0
    %v440 = vadd.f32 0.0, %v439
    %v441 = vpop.f32.mrf.mxu0
    %442 = vmatprep.mubr.f32.mxu0 0.0
    %443 = vmatmul.mubr.f32.gmra.mxu0 %v205
    %v444 = vpop.f32.mrf.mxu0
    %v445 = vadd.f32 0.0, %v444
    %v446 = vpop.f32.mrf.mxu0
    %447 = vmatprep.mubr.f32.mxu0 0.0
    %448 = vmatmul.mubr.f32.gmra.mxu0 %v206
    %v449 = vpop.f32.mrf.mxu0
    %v450 = vadd.f32 0.0, %v449
    %v451 = vpop.f32.mrf.mxu0
    %452 = vmatprep.mubr.f32.mxu0 0.0
    %453 = vmatmul.mubr.f32.gmra.mxu0 %v207
    %v454 = vpop.f32.mrf.mxu0
    %v455 = vadd.f32 0.0, %v454
    %v456 = vpop.f32.mrf.mxu0
    %457 = vmatprep.mubr.f32.mxu0 0.0
    %458 = vmatmul.mubr.f32.gmra.mxu0 %v208
    %v459 = vpop.f32.mrf.mxu0
    %v460 = vadd.f32 0.0, %v459
    %v461 = vpop.f32.mrf.mxu0
    %462 = vmatprep.mubr.f32.mxu0 0.0
    %463 = vmatmul.mubr.f32.gmra.mxu0 %v209
    %v464 = vpop.f32.mrf.mxu0
    %v465 = vadd.f32 0.0, %v464
    %v466 = vpop.f32.mrf.mxu0
    %467 = vmatprep.mubr.f32.mxu0 0.0
    %468 = vmatmul.mubr.f32.gmra.mxu0 %v210
    %v469 = vpop.f32.mrf.mxu0
    %v470 = vadd.f32 0.0, %v469
    %v471 = vpop.f32.mrf.mxu0
    %472 = vmatprep.mubr.f32.mxu0 0.0
    %473 = vmatmul.mubr.f32.gmra.mxu0 %v211
    %v474 = vpop.f32.mrf.mxu0
    %v475 = vadd.f32 0.0, %v474
    %v476 = vpop.f32.mrf.mxu0
    %477 = vmatprep.mubr.f32.mxu0 0.0
    %478 = vmatmul.mubr.f32.gmra.mxu0 %v212
    %v479 = vpop.f32.mrf.mxu0
    %v480 = vadd.f32 0.0, %v479
    %v481 = vpop.f32.mrf.mxu0
    %482 = vmatprep.mubr.f32.mxu0 0.0
    %483 = vmatmul.mubr.f32.gmra.mxu0 %v213
    %v484 = vpop.f32.mrf.mxu0
    %v485 = vadd.f32 0.0, %v484
    %v486 = vpop.f32.mrf.mxu0
    %487 = vmatprep.mubr.f32.mxu0 0.0
    %488 = vmatmul.mubr.f32.gmra.mxu0 %v214
    %v489 = vpop.f32.mrf.mxu0
    %v490 = vadd.f32 0.0, %v489
    %v491 = vpop.f32.mrf.mxu0
    %492 = vmatprep.mubr.f32.mxu0 0.0
    %493 = vmatmul.mubr.f32.gmra.mxu0 %v215
    %v494 = vpop.f32.mrf.mxu0
    %v495 = vadd.f32 0.0, %v494
    %v496 = vpop.f32.mrf.mxu0
    %497 = vmatprep.mubr.f32.mxu0 0.0
    %498 = vmatmul.mubr.f32.gmra.mxu0 %v216
    %v499 = vpop.f32.mrf.mxu0
    %v500 = vadd.f32 0.0, %v499
    %v501 = vpop.f32.mrf.mxu0
    %502 = vmatprep.mubr.f32.mxu0 0.0
    %503 = vmatmul.mubr.f32.gmra.mxu0 %v217
    %v504 = vpop.f32.mrf.mxu0
    %v505 = vadd.f32 0.0, %v504
    %v506 = vpop.f32.mrf.mxu0
    %507 = vdwg.mxu0
    %v508 = vmul.f32 %v285, 0.015625
    %v509 = vmul.f32 %v290, 0.015625
    %v510 = vmul.f32 %v295, 0.015625
    %v511 = vmul.f32 %v300, 0.015625
    %v512 = vmul.f32 %v305, 0.015625
    %v513 = vmul.f32 %v310, 0.015625
    %v514 = vmul.f32 %v315, 0.015625
    %v515 = vmul.f32 %v320, 0.015625
    %v516 = vmul.f32 %v325, 0.015625
    %v517 = vmul.f32 %v330, 0.015625
    %v518 = vmul.f32 %v335, 0.015625
    %v519 = vmul.f32 %v340, 0.015625
    %v520 = vmul.f32 %v345, 0.015625
    %v521 = vmul.f32 %v350, 0.015625
    %v522 = vmul.f32 %v355, 0.015625
    %v523 = vmul.f32 %v360, 0.015625
    %v524 = vmul.f32 %v430, 0.015625
    %v525 = vmul.f32 %v435, 0.015625
    %v526 = vmul.f32 %v440, 0.015625
    %v527 = vmul.f32 %v445, 0.015625
    %v528 = vmul.f32 %v450, 0.015625
    %v529 = vmul.f32 %v455, 0.015625
    %v530 = vmul.f32 %v460, 0.015625
    %v531 = vmul.f32 %v465, 0.015625
    %v532 = vmul.f32 %v470, 0.015625
    %v533 = vmul.f32 %v475, 0.015625
    %v534 = vmul.f32 %v480, 0.015625
    %v535 = vmul.f32 %v485, 0.015625
    %v536 = vmul.f32 %v490, 0.015625
    %v537 = vmul.f32 %v495, 0.015625
    %v538 = vmul.f32 %v500, 0.015625
    %v539 = vmul.f32 %v505, 0.015625
    %540 = vst [vmem:[#allocation5] sm:$0xff] %v508
    %541 = vst [vmem:[#allocation5 + $0x8] sm:$0xff] %v509
    %542 = vst [vmem:[#allocation5 + $0x10] sm:$0xff] %v510
    %543 = vst [vmem:[#allocation5 + $0x18] sm:$0xff] %v511
    %544 = vst [vmem:[#allocation5 + $0x20] sm:$0xff] %v512
    %545 = vst [vmem:[#allocation5 + $0x28] sm:$0xff] %v513
    %546 = vst [vmem:[#allocation5 + $0x30] sm:$0xff] %v514
    %547 = vst [vmem:[#allocation5 + $0x38] sm:$0xff] %v515
    %548 = vst [vmem:[#allocation5 + $0x40] sm:$0xff] %v516
    %549 = vst [vmem:[#allocation5 + $0x48] sm:$0xff] %v517
    %550 = vst [vmem:[#allocation5 + $0x50] sm:$0xff] %v518
    %551 = vst [vmem:[#allocation5 + $0x58] sm:$0xff] %v519
    %552 = vst [vmem:[#allocation5 + $0x60] sm:$0xff] %v520
    %553 = vst [vmem:[#allocation5 + $0x68] sm:$0xff] %v521
    %554 = vst [vmem:[#allocation5 + $0x70] sm:$0xff] %v522
    %555 = vst [vmem:[#allocation5 + $0x78] sm:$0xff] %v523
    %556 = vst [vmem:[#allocation5 + $0x80] sm:$0xff] %v524
    %557 = vst [vmem:[#allocation5 + $0x88] sm:$0xff] %v525
    %558 = vst [vmem:[#allocation5 + $0x90] sm:$0xff] %v526
    %559 = vst [vmem:[#allocation5 + $0x98] sm:$0xff] %v527
    %560 = vst [vmem:[#allocation5 + $0xa0] sm:$0xff] %v528
    %561 = vst [vmem:[#allocation5 + $0xa8] sm:$0xff] %v529
    %562 = vst [vmem:[#allocation5 + $0xb0] sm:$0xff] %v530
    %563 = vst [vmem:[#allocation5 + $0xb8] sm:$0xff] %v531
    %564 = vst [vmem:[#allocation5 + $0xc0] sm:$0xff] %v532
    %565 = vst [vmem:[#allocation5 + $0xc8] sm:$0xff] %v533
    %566 = vst [vmem:[#allocation5 + $0xd0] sm:$0xff] %v534
    %567 = vst [vmem:[#allocation5 + $0xd8] sm:$0xff] %v535
    %568 = vst [vmem:[#allocation5 + $0xe0] sm:$0xff] %v536
    %569 = vst [vmem:[#allocation5 + $0xe8] sm:$0xff] %v537
    %570 = vst [vmem:[#allocation5 + $0xf0] sm:$0xff] %v538
    %571 = vst [vmem:[#allocation5 + $0xf8] sm:$0xff] %v539
    // Predicated region
    $region10: #{tpu_custom_call.1} parent=1 // pred_check
      _
    $region11: #{tpu_custom_call.1} parent=1 // pred_check_branch
      %573 = sbr.rel (0) target = $region13
    $region12: #{tpu_custom_call.1} parent=1 // pred_region
      %s575 = ssub.s32 4096, 4096
      %576 = vsyncadd [#allocation4], %s575
      %s577 = sshll.u32 [#allocation5], 4
      %s578 = int_to_ptr.vmem [resolvable:$true] %s577
      %583 = dma.vmem_to_hbm [thread:$0]  %s578, 4096, %s1, [#allocation4], 128, 128, 8
    $region13: #{tpu_custom_call.1} parent=1 // pred_fallthru
      _
    // Predicated region
    $region14: #{tpu_custom_call.1} parent=1 // pred_check
      _
    $region15: #{tpu_custom_call.1} parent=1 // pred_check_branch
      %585 = sbr.rel (0) target = $region17
    $region16: #{tpu_custom_call.1} parent=1 // pred_region
      %586 = dma.done [#allocation4], 4096
    $region17: #{tpu_custom_call.1} parent=1 // pred_fallthru
      _
    %587 = vsyncpa [#allocation3], 1
    %588 = vsyncpa [#allocation4], 1

</llo_original>
